<compile_context>
chip_gen: v5e
topology: v5e:2x2
jax: 0.10.0
libtpu: 0.0.40
codegen_flags: <defaults>
</compile_context>

<pallas_src>
import functools

import jax
import jax.numpy as jnp
from jax.experimental import pallas as pl
from jax.experimental.pallas import tpu as pltpu


def _round_up(x, m):
    return ((x + m - 1) // m) * m


def _dynamics_gru_kernel(hidden_dim,
                         z_ref, wcat_ref, bcat_ref, bin_ref,
                         wout_ref, bout_ref,
                         out_ref):
    H = hidden_dim
    z = z_ref[...]                                                    # (tm, L)

    # Fused matmul: columns [0:H] = h_in pre-bias, [H:4H] = hidden-side gate
    # pre-activations (r, u, n).  Accumulate in f32 regardless of operand dtype.
    acc = jnp.dot(z, wcat_ref[...],
                  preferred_element_type=jnp.float32) + bcat_ref[...]  # (tm, 4H) f32

    h_in = acc[:, 0 * H:1 * H]                                        # (tm, H)
    r = jax.nn.sigmoid(acc[:, 1 * H:2 * H])
    u = jax.nn.sigmoid(acc[:, 2 * H:3 * H])
    n = jnp.tanh(bin_ref[...] + r * acc[:, 3 * H:4 * H])

    h_out = (1.0 - u) * n + u * h_in                                  # (tm, H) f32

    # h_out -> z_out (Linear hidden -> latent), f32 accumulation.
    out = jnp.dot(h_out.astype(wout_ref.dtype), wout_ref[...],
                  preferred_element_type=jnp.float32) + bout_ref[...]
    out_ref[...] = out.astype(out_ref.dtype)


def dynamics_gru_forward(z, params, *, hidden_dim, latent_dim,
                         tm_max=512, mxu_dtype=jnp.float32):
    """z: [..., latent_dim] float32. Returns z_out with the same shape.

    mxu_dtype=jnp.bfloat16 streams z and the weights to the MXU in bf16
    (mem-bound win on v6e/v7x); gate math and accumulation stay f32.
    """
    L, H = latent_dim, hidden_dim
    lead_shape = z.shape[:-1]
    z2 = z.reshape(-1, L).astype(jnp.float32)
    N = z2.shape[0]

    hi = jax.lax.Precision.HIGHEST

    # --- wrapper-side weight fusion ---------------------------------------
    w_zh_t = params["w_zh"].T.astype(jnp.float32)              # (L, H)
    w_hh_t = params["w_hh"].T.astype(jnp.float32)              # (H, 3H)
    w_g = jnp.dot(w_zh_t, w_hh_t, precision=hi)                # (L, 3H)
    w_cat = jnp.concatenate([w_zh_t, w_g], axis=1)             # (L, 4H)

    b_zh = params["b_zh"].astype(jnp.float32)                  # (H,)
    b_hh = params["b_hh"].astype(jnp.float32)                  # (3H,)
    b_ih = params["b_ih"].astype(jnp.float32)                  # (3H,)
    b_g = jnp.dot(b_zh, w_hh_t, precision=hi)                  # (3H,)
    b_cat = jnp.concatenate([
        b_zh,                                                  # h_in bias
        b_g[0 * H:1 * H] + b_hh[0 * H:1 * H] + b_ih[0 * H:1 * H],   # r
        b_g[1 * H:2 * H] + b_hh[1 * H:2 * H] + b_ih[1 * H:2 * H],   # u
        b_g[2 * H:3 * H] + b_hh[2 * H:3 * H],                       # n (hidden side)
    ]).reshape(1, 4 * H)
    b_in = b_ih[2 * H:3 * H].reshape(1, H)                     # added inside tanh

    w_out = params["w_hz"].T.astype(jnp.float32)               # (H, L)
    b_out = params["b_hz"].astype(jnp.float32).reshape(1, L)

    # bf16 streams for the MXU operands only; biases / activations stay f32.
    z_in = z2.astype(mxu_dtype)
    w_cat = w_cat.astype(mxu_dtype)
    w_out = w_out.astype(mxu_dtype)

    # --- row tiling: go as big as VMEM trivially allows --------------------
    tm = min(tm_max, _round_up(max(N, 1), 8))
    Np = _round_up(max(N, 1), tm)
    if Np != N:
        z_in = jnp.pad(z_in, ((0, Np - N), (0, 0)))

    kernel = functools.partial(_dynamics_gru_kernel, H)

    out = pl.pallas_call(
        kernel,
        out_shape=jax.ShapeDtypeStruct((Np, L), jnp.float32),
        grid=(Np // tm,),
        in_specs=[
            pl.BlockSpec((tm, L), lambda i: (i, 0)),            # z rows
            pl.BlockSpec((L, 4 * H), lambda i: (0, 0)),         # fused W_cat
            pl.BlockSpec((1, 4 * H), lambda i: (0, 0)),         # fused bias row
            pl.BlockSpec((1, H), lambda i: (0, 0)),             # b_in (inside tanh)
            pl.BlockSpec((H, L), lambda i: (0, 0)),             # W_hz^T (h_to_z)
            pl.BlockSpec((1, L), lambda i: (0, 0)),             # b_hz
        ],
        out_specs=pl.BlockSpec((tm, L), lambda i: (i, 0)),
        compiler_params=pltpu.CompilerParams(
            dimension_semantics=("parallel",)),
    )(z_in, w_cat, b_cat, b_in, w_out, b_out)

    out = out[:N]
    return out.reshape(lead_shape + (L,))


def _reference_forward(z, params, *, hidden_dim, latent_dim):
    """Pure-JAX reference matching torch semantics (unfused, for verification)."""
    H = hidden_dim
    z2 = z.reshape(-1, latent_dim).astype(jnp.float32)
    h_in = z2 @ params["w_zh"].T + params["b_zh"]
    g = h_in @ params["w_hh"].T
    b_hh, b_ih = params["b_hh"], params["b_ih"]
    r = jax.nn.sigmoid(g[:, :H] + b_hh[:H] + b_ih[:H])
    u = jax.nn.sigmoid(g[:, H:2 * H] + b_hh[H:2 * H] + b_ih[H:2 * H])
    n = jnp.tanh(b_ih[2 * H:] + r * (g[:, 2 * H:] + b_hh[2 * H:]))
    h_out = (1.0 - u) * n + u * h_in
    z_out = h_out @ params["w_hz"].T + params["b_hz"]
    return z_out.reshape(z.shape[:-1] + (latent_dim,))


def init_params(key, hidden_dim, latent_dim):
    ks = jax.random.split(key, 7)
    s = 0.1
    return {
        # z_to_h : Linear(latent_dim -> hidden_dim)
        "w_zh": s * jax.random.normal(ks[0], (hidden_dim, latent_dim), jnp.float32),
        "b_zh": s * jax.random.normal(ks[1], (hidden_dim,), jnp.float32),
        # GRUCell(0, hidden_dim): weight_ih is (3H, 0) -> contributes nothing,
        # but bias_ih (3H,) still participates.
        "w_hh": s * jax.random.normal(ks[2], (3 * hidden_dim, hidden_dim), jnp.float32),
        "b_hh": s * jax.random.normal(ks[3], (3 * hidden_dim,), jnp.float32),
        "b_ih": s * jax.random.normal(ks[4], (3 * hidden_dim,), jnp.float32),
        # h_to_z : Linear(hidden_dim -> latent_dim)
        "w_hz": s * jax.random.normal(ks[5], (latent_dim, hidden_dim), jnp.float32),
        "b_hz": s * jax.random.normal(ks[6], (latent_dim,), jnp.float32),
    }


if __name__ == "__main__":
    hidden_dim = 32
    latent_dim = 16
    batch, seq = 2, 8

    key = jax.random.PRNGKey(0)
    k_param, k_z = jax.random.split(key)
    params = init_params(k_param, hidden_dim, latent_dim)
    z = jax.random.normal(k_z, (batch, seq, latent_dim), jnp.float32)

    ref = _reference_forward(z, params,
                             hidden_dim=hidden_dim, latent_dim=latent_dim)

    # f32 MXU operands (exact-parity path).
    out = dynamics_gru_forward(z, params,
                               hidden_dim=hidden_dim, latent_dim=latent_dim)
    out = jax.block_until_ready(out)
    assert out.shape == (batch, seq, latent_dim)
    assert jnp.allclose(out, ref, atol=1e-4, rtol=1e-4)

    # bf16-stream path (v6e/v7x mem-bound lever); looser tolerance for bf16 operands.
    out_bf16 = dynamics_gru_forward(z, params,
                                    hidden_dim=hidden_dim, latent_dim=latent_dim,
                                    mxu_dtype=jnp.bfloat16)
    out_bf16 = jax.block_until_ready(out_bf16)
    assert jnp.allclose(out_bf16, ref, atol=1e-1, rtol=1e-1)

    print("KERNEL_OK")
</pallas_src>

<mosaic_0001>
module attributes {stable_mosaic.version = 11 : i64} {
  func.func @_dynamics_gru_kernel(%arg0: i32, %arg1: memref<16x16xf32, #tpu.memory_space<vmem>>, %arg2: memref<16x128xf32, #tpu.memory_space<vmem>>, %arg3: memref<1x128xf32, #tpu.memory_space<vmem>>, %arg4: memref<1x32xf32, #tpu.memory_space<vmem>>, %arg5: memref<32x16xf32, #tpu.memory_space<vmem>>, %arg6: memref<1x16xf32, #tpu.memory_space<vmem>>, %arg7: memref<16x16xf32, #tpu.memory_space<vmem>>) attributes {dimension_semantics = [#tpu.dimension_semantics<parallel>], iteration_bounds = array<i64: 1>, scalar_prefetch = 0 : i64, scratch_operands = 0 : i64, tpu.core_type = #tpu.core_type<tc>, window_params = [{transform_indices = @transform_0, window_bounds = array<i64: 16, 16>}, {pipeline_mode = #tpu.pipeline_mode<synchronous>, transform_indices = @transform_1, window_bounds = array<i64: 16, 128>}, {pipeline_mode = #tpu.pipeline_mode<synchronous>, transform_indices = @transform_2, window_bounds = array<i64: 1, 128>}, {pipeline_mode = #tpu.pipeline_mode<synchronous>, transform_indices = @transform_3, window_bounds = array<i64: 1, 32>}, {pipeline_mode = #tpu.pipeline_mode<synchronous>, transform_indices = @transform_4, window_bounds = array<i64: 32, 16>}, {pipeline_mode = #tpu.pipeline_mode<synchronous>, transform_indices = @transform_5, window_bounds = array<i64: 1, 16>}, {transform_indices = @transform_6, window_bounds = array<i64: 16, 16>}]} {
    %c0 = arith.constant 0 : index
    %c0_0 = arith.constant 0 : index
    %0 = vector.load %arg1[%c0, %c0_0] : memref<16x16xf32, #tpu.memory_space<vmem>>, vector<16x16xf32>
    %c0_1 = arith.constant 0 : index
    %c0_2 = arith.constant 0 : index
    %1 = vector.load %arg2[%c0_1, %c0_2] : memref<16x128xf32, #tpu.memory_space<vmem>>, vector<16x128xf32>
    %cst = arith.constant dense<0.000000e+00> : vector<16x128xf32>
    %2 = tpu.matmul %0, %1, %cst {dimension_numbers = #tpu.dot_dimension_numbers<[1], [0], [0], [1], [0, 0, 1, 1], [], []>} : vector<16x16xf32>, vector<16x128xf32>, vector<16x128xf32> -> vector<16x128xf32>
    %c0_3 = arith.constant 0 : index
    %c0_4 = arith.constant 0 : index
    %3 = vector.load %arg3[%c0_3, %c0_4] : memref<1x128xf32, #tpu.memory_space<vmem>>, vector<1x128xf32>
    %4 = vector.broadcast %3 : vector<1x128xf32> to vector<16x128xf32>
    %5 = arith.addf %2, %4 : vector<16x128xf32>
    %6 = vector.extract_strided_slice %5 {offsets = [0, 0], sizes = [16, 32], strides = [1, 1]} : vector<16x128xf32> to vector<16x32xf32>
    %7 = vector.extract_strided_slice %5 {offsets = [0, 32], sizes = [16, 32], strides = [1, 1]} : vector<16x128xf32> to vector<16x32xf32>
    %8 = arith.negf %7 : vector<16x32xf32>
    %9 = math.exp %8 : vector<16x32xf32>
    %cst_5 = arith.constant 1.000000e+00 : f32
    %10 = vector.broadcast %cst_5 : f32 to vector<16x32xf32>
    %11 = arith.addf %10, %9 : vector<16x32xf32>
    %12 = arith.divf %10, %11 : vector<16x32xf32>
    %13 = vector.extract_strided_slice %5 {offsets = [0, 64], sizes = [16, 32], strides = [1, 1]} : vector<16x128xf32> to vector<16x32xf32>
    %14 = arith.negf %13 : vector<16x32xf32>
    %15 = math.exp %14 : vector<16x32xf32>
    %cst_6 = arith.constant 1.000000e+00 : f32
    %16 = vector.broadcast %cst_6 : f32 to vector<16x32xf32>
    %17 = arith.addf %16, %15 : vector<16x32xf32>
    %18 = arith.divf %16, %17 : vector<16x32xf32>
    %c0_7 = arith.constant 0 : index
    %c0_8 = arith.constant 0 : index
    %19 = vector.load %arg4[%c0_7, %c0_8] : memref<1x32xf32, #tpu.memory_space<vmem>>, vector<1x32xf32>
    %20 = vector.extract_strided_slice %5 {offsets = [0, 96], sizes = [16, 32], strides = [1, 1]} : vector<16x128xf32> to vector<16x32xf32>
    %21 = arith.mulf %12, %20 : vector<16x32xf32>
    %22 = vector.broadcast %19 : vector<1x32xf32> to vector<16x32xf32>
    %23 = arith.addf %22, %21 : vector<16x32xf32>
    %24 = math.tanh %23 : vector<16x32xf32>
    %cst_9 = arith.constant 1.000000e+00 : f32
    %25 = vector.broadcast %cst_9 : f32 to vector<16x32xf32>
    %26 = arith.subf %25, %18 : vector<16x32xf32>
    %27 = arith.mulf %26, %24 : vector<16x32xf32>
    %28 = arith.mulf %18, %6 : vector<16x32xf32>
    %29 = arith.addf %27, %28 : vector<16x32xf32>
    %c0_10 = arith.constant 0 : index
    %c0_11 = arith.constant 0 : index
    %30 = vector.load %arg5[%c0_10, %c0_11] : memref<32x16xf32, #tpu.memory_space<vmem>>, vector<32x16xf32>
    %cst_12 = arith.constant dense<0.000000e+00> : vector<16x16xf32>
    %31 = tpu.matmul %29, %30, %cst_12 {dimension_numbers = #tpu.dot_dimension_numbers<[1], [0], [0], [1], [0, 0, 1, 1], [], []>} : vector<16x32xf32>, vector<32x16xf32>, vector<16x16xf32> -> vector<16x16xf32>
    %c0_13 = arith.constant 0 : index
    %c0_14 = arith.constant 0 : index
    %32 = vector.load %arg6[%c0_13, %c0_14] : memref<1x16xf32, #tpu.memory_space<vmem>>, vector<1x16xf32>
    %33 = vector.broadcast %32 : vector<1x16xf32> to vector<16x16xf32>
    %34 = arith.addf %31, %33 : vector<16x16xf32>
    %c0_15 = arith.constant 0 : index
    %c0_16 = arith.constant 0 : index
    %35 = vector.load %arg7[%c0_15, %c0_16] : memref<16x16xf32, #tpu.memory_space<vmem>>, vector<16x16xf32>
    tpu.vector_store %arg7[%c0_15, %c0_16], %34 {strides = array<i32>} : memref<16x16xf32, #tpu.memory_space<vmem>>, vector<16x16xf32>,
    return
  }
  func.func @transform_0(%arg0: i32) -> (i32, i32) {
    %c0_i32 = arith.constant 0 : i32
    %c0_i32_0 = arith.constant 0 : i32
    return %arg0, %c0_i32 : i32, i32
  }
  func.func @transform_1(%arg0: i32) -> (i32, i32) {
    %c0_i32 = arith.constant 0 : i32
    %c0_i32_0 = arith.constant 0 : i32
    %c0_i32_1 = arith.constant 0 : i32
    return %c0_i32, %c0_i32_0 : i32, i32
  }
  func.func @transform_2(%arg0: i32) -> (i32, i32) {
    %c0_i32 = arith.constant 0 : i32
    %c0_i32_0 = arith.constant 0 : i32
    %c0_i32_1 = arith.constant 0 : i32
    return %c0_i32, %c0_i32_0 : i32, i32
  }
  func.func @transform_3(%arg0: i32) -> (i32, i32) {
    %c0_i32 = arith.constant 0 : i32
    %c0_i32_0 = arith.constant 0 : i32
    %c0_i32_1 = arith.constant 0 : i32
    return %c0_i32, %c0_i32_0 : i32, i32
  }
  func.func @transform_4(%arg0: i32) -> (i32, i32) {
    %c0_i32 = arith.constant 0 : i32
    %c0_i32_0 = arith.constant 0 : i32
    %c0_i32_1 = arith.constant 0 : i32
    return %c0_i32, %c0_i32_0 : i32, i32
  }
  func.func @transform_5(%arg0: i32) -> (i32, i32) {
    %c0_i32 = arith.constant 0 : i32
    %c0_i32_0 = arith.constant 0 : i32
    %c0_i32_1 = arith.constant 0 : i32
    return %c0_i32, %c0_i32_0 : i32, i32
  }
  func.func @transform_6(%arg0: i32) -> (i32, i32) {
    %c0_i32 = arith.constant 0 : i32
    %c0_i32_0 = arith.constant 0 : i32
    return %arg0, %c0_i32 : i32, i32
  }
}

</mosaic_0001>

<llo_original>
// kernel: tpu_custom_call.1
$region0: #{tpu_custom_call.1}
  #allocation0 [shape = 'u32[]', space=smem, size = 0x4, offset = 0x4, fixed_abs, tag = 'smem constant byte address 0x4 - core index']
  #allocation1 [shape = 'u32[72,128]{1,0:T(1,128)}', space=vmem, size = 0x9000, scoped, tag = 'internal scratch']
  %s0 = inlined_call_operand.vmem [shape: f32[16,16], index: 0, kind: input, shape index: {}]
  %s1 = inlined_call_operand.vmem [shape: f32[16,128], index: 1, kind: input, shape index: {}]
  %s2 = inlined_call_operand.vmem [shape: f32[1,128], index: 2, kind: input, shape index: {}]
  %s3 = inlined_call_operand.vmem [shape: f32[1,32], index: 3, kind: input, shape index: {}]
  %s4 = inlined_call_operand.vmem [shape: f32[32,16], index: 4, kind: input, shape index: {}]
  %s5 = inlined_call_operand.vmem [shape: f32[1,16], index: 5, kind: input, shape index: {}]
  %s6 = inlined_call_operand.hbm [shape: f32[16,16], index: 6, kind: output, shape index: {}]
  %s7 = sld [smem:[#allocation0]]
  $region34: #{tpu_custom_call.1} parent=0
    _
  %s9 = ssub.s32 1, %s7
  %s10 = scalar_select 0, %s9, %s7
  $region1: #{tpu_custom_call.1} parent=0
    #allocation2 [shape = 'u8[8192]{0}', space=vmem, size = 0x2000, scoped, tag = 'output window, operand 0, single buffered']
    #allocation3 [shape = 's32[1]{0}', space=sflag, size = 0x4, scoped, tag = 'scoped memory for tpu_custom_call.1']
    %11 = vsyncpa [#allocation3], 0
    // Predicated region
    $region2: #{tpu_custom_call.1} parent=1 // pred_check
      _
    $region3: #{tpu_custom_call.1} parent=1 // pred_check_branch
      %13 = sbr.rel (0) target = $region5
    $region4: #{tpu_custom_call.1} parent=1 // pred_region
      _
    $region5: #{tpu_custom_call.1} parent=1 // pred_fallthru
      _
    // Predicated region
    $region6: #{tpu_custom_call.1} parent=1 // pred_check
      _
    $region7: #{tpu_custom_call.1} parent=1 // pred_check_branch
      %15 = sbr.rel (0) target = $region9
    $region8: #{tpu_custom_call.1} parent=1 // pred_region
      _
    $region9: #{tpu_custom_call.1} parent=1 // pred_fallthru
      _
    // Predicated region
    $region10: #{tpu_custom_call.1} parent=1 // pred_check
      _
    $region11: #{tpu_custom_call.1} parent=1 // pred_check_branch
      %17 = sbr.rel (0) target = $region13
    $region12: #{tpu_custom_call.1} parent=1 // pred_region
      _
    $region13: #{tpu_custom_call.1} parent=1 // pred_fallthru
      _
    // Predicated region
    $region14: #{tpu_custom_call.1} parent=1 // pred_check
      _
    $region15: #{tpu_custom_call.1} parent=1 // pred_check_branch
      %19 = sbr.rel (0) target = $region17
    $region16: #{tpu_custom_call.1} parent=1 // pred_region
      _
    $region17: #{tpu_custom_call.1} parent=1 // pred_fallthru
      _
    // Predicated region
    $region18: #{tpu_custom_call.1} parent=1 // pred_check
      _
    $region19: #{tpu_custom_call.1} parent=1 // pred_check_branch
      %21 = sbr.rel (0) target = $region21
    $region20: #{tpu_custom_call.1} parent=1 // pred_region
      _
    $region21: #{tpu_custom_call.1} parent=1 // pred_fallthru
      _
    // Predicated region
    $region22: #{tpu_custom_call.1} parent=1 // pred_check
      _
    $region23: #{tpu_custom_call.1} parent=1 // pred_check_branch
      %23 = sbr.rel (0) target = $region25
    $region24: #{tpu_custom_call.1} parent=1 // pred_region
      _
    $region25: #{tpu_custom_call.1} parent=1 // pred_fallthru
      _
    %v24 = vld [vmem:[%s0] sm:$0xff]
    %v25 = vld [vmem:[%s0 + $0x8] sm:$0xff]
    %v26 = vld [vmem:[%s1] sm:$0xff]
    %v27 = vld [vmem:[%s1 + $0x8] sm:$0xff]
    %v28 = vld [vmem:[%s2] sm:$0x1]
    %v30 = vperm.slane %v28, 0
    %vm32 = vcmask 130048
    %v34 = vsel %vm32, %v24, 0
    %v37 = vsel %vm32, %v25, 0
    %39 = vmatpush.msra.mxu0 0.0
    %40 = vmatpush.msra.mxu0 0.0
    %41 = vmatpush.msra.mxu0 0.0
    %42 = vmatpush.msra.mxu0 0.0
    %43 = vmatpush.msra.mxu0 0.0
    %44 = vmatpush.msra.mxu0 0.0
    %45 = vmatpush.msra.mxu0 0.0
    %46 = vmatpush.msra.mxu0 0.0
    %47 = vmatpush.msra.mxu0 0.0
    %48 = vmatpush.msra.mxu0 0.0
    %49 = vmatpush.msra.mxu0 0.0
    %50 = vmatpush.msra.mxu0 0.0
    %51 = vmatpush.msra.mxu0 0.0
    %52 = vmatpush.msra.mxu0 0.0
    %53 = vmatpush.msra.mxu0 %v27
    %54 = vmatpush.msra.mxu0 %v26
    %55 = vmatmul.f32.gmra.mxu0 %v34
    %v56 = vpop.f32.mrf.mxu0
    %v57 = vadd.f32 %v30, %v56
    %58 = vmatmul.f32.gmra.mxu0 %v37
    %v59 = vpop.f32.mrf.mxu0
    %v60 = vadd.f32 %v30, %v59
    %61 = vdwg.mxu0
    %v62 = vxor.u32 %v57, 2147483648
    %v63 = vxor.u32 %v60, 2147483648
    %v64 = vmul.f32 %v62, 1.442695
    %v65 = vpow.pop %v64
    %v66 = vmul.f32 %v63, 1.442695
    %v67 = vpow.pop %v66
    %v68 = vadd.f32 %v65, 1.0
    %v69 = vadd.f32 %v67, 1.0
    %v70 = vrcp.pop %v68
    %v71 = vmul.f32 %v68, %v70
    %v72 = vsub.f32 1.0, %v71
    %v73 = vmul.f32 %v70, %v72
    %v74 = vadd.f32 %v70, %v73
    %vm75 = vweird.f32 %v68
    %vm76 = vweird.f32 %v70
    %vm77 = vmor %vm75, %vm76
    %v78 = vsel %vm77, %v70, %v74
    %v79 = vand.u32 2147483647, %v68
    %vm80 = vcmp.eq.f32.partialorder %v79, 8.507059e+37
    %v81 = vand.u32 %v68, 2147483648
    %v82 = vor.u32 1.1754944e-38, %v81
    %v83 = vsel %vm80, %v82, %v78
    %v84 = vmul.f32 1.0, %v83
    %v85 = vrcp.pop %v69
    %v86 = vmul.f32 %v69, %v85
    %v87 = vsub.f32 1.0, %v86
    %v88 = vmul.f32 %v85, %v87
    %v89 = vadd.f32 %v85, %v88
    %vm90 = vweird.f32 %v69
    %vm91 = vweird.f32 %v85
    %vm92 = vmor %vm90, %vm91
    %v93 = vsel %vm92, %v85, %v89
    %v94 = vand.u32 2147483647, %v69
    %vm95 = vcmp.eq.f32.partialorder %v94, 8.507059e+37
    %v96 = vand.u32 %v69, 2147483648
    %v97 = vor.u32 1.1754944e-38, %v96
    %v98 = vsel %vm95, %v97, %v93
    %v99 = vmul.f32 1.0, %v98
    %v100 = vld [vmem:[%s3] sm:$0x1]
    %103 = vrot.lane.b32.xlu0 %v57, 64
    %v104 = vpop.permute.xlu0 %103
    %105 = vrot.lane.b32.xlu0 %v60, 64
    %v106 = vpop.permute.xlu0 %105
    %v109 = vmul.f32 %v84, %v104
    %v110 = vmul.f32 %v99, %v106
    %v112 = vperm.slane %v100, 0
    %116 = vrot.lane.b32.xlu0 %v109, 96
    %v117 = vpop.permute.xlu0 %116
    %118 = vrot.lane.b32.xlu0 %v110, 96
    %v119 = vpop.permute.xlu0 %118
    %v122 = vadd.f32 %v112, %v117
    %v123 = vadd.f32 %v112, %v119
    %v124 = vtanh.pop %v122
    %v125 = vtanh.pop %v123
    %v126 = vsub.f32 1.0, %v84
    %v127 = vsub.f32 1.0, %v99
    %130 = vrot.lane.b32.xlu0 %v124, 64
    %v131 = vpop.permute.xlu0 %130
    %132 = vrot.lane.b32.xlu0 %v125, 64
    %v133 = vpop.permute.xlu0 %132
    %v136 = vmul.f32 %v126, %v131
    %v137 = vmul.f32 %v127, %v133
    %v138 = vadd.f32 %v136, %v109
    %v139 = vadd.f32 %v137, %v110
    %v140 = vld [vmem:[%s4] sm:$0xff]
    %v141 = vld [vmem:[%s4 + $0x8] sm:$0xff]
    %v142 = vld [vmem:[%s4 + $0x10] sm:$0xff]
    %v143 = vld [vmem:[%s4 + $0x18] sm:$0xff]
    %v144 = vld [vmem:[%s5] sm:$0x1]
    %v146 = vperm.slane %v144, 0
    %150 = vrot.lane.b32.xlu0 %v138, 64
    %v151 = vpop.permute.xlu0 %150
    %152 = vrot.lane.b32.xlu0 %v139, 64
    %v153 = vpop.permute.xlu0 %152
    %vm154 = vcmask 261120
    %v155 = vsel %vm154, %v151, 0
    %v157 = vsel %vm154, %v153, 0
    %159 = vmatpush.msra.mxu0 0.0
    %160 = vmatpush.msra.mxu0 0.0
    %161 = vmatpush.msra.mxu0 0.0
    %162 = vmatpush.msra.mxu0 0.0
    %163 = vmatpush.msra.mxu0 0.0
    %164 = vmatpush.msra.mxu0 0.0
    %165 = vmatpush.msra.mxu0 0.0
    %166 = vmatpush.msra.mxu0 0.0
    %167 = vmatpush.msra.mxu0 0.0
    %168 = vmatpush.msra.mxu0 0.0
    %169 = vmatpush.msra.mxu0 0.0
    %170 = vmatpush.msra.mxu0 0.0
    %171 = vmatpush.msra.mxu0 %v143
    %172 = vmatpush.msra.mxu0 %v142
    %173 = vmatpush.msra.mxu0 %v141
    %174 = vmatpush.msra.mxu0 %v140
    %175 = vmatmul.f32.gmra.mxu0 %v155
    %v176 = vpop.f32.mrf.mxu0
    %v177 = vadd.f32 %v146, %v176
    %178 = vmatmul.f32.gmra.mxu0 %v157
    %v179 = vpop.f32.mrf.mxu0
    %v180 = vadd.f32 %v146, %v179
    %181 = vdwg.mxu0
    %182 = vst.msk [vmem:[#allocation2] sm:$0xff] %vm32, %v177
    %183 = vst.msk [vmem:[#allocation2 + $0x8] sm:$0xff] %vm32, %v180
    // Predicated region
    $region26: #{tpu_custom_call.1} parent=1 // pred_check
      _
    $region27: #{tpu_custom_call.1} parent=1 // pred_check_branch
      %185 = sbr.rel (0) target = $region29
    $region28: #{tpu_custom_call.1} parent=1 // pred_region
      %187 = vsyncadd [#allocation3], 0
      %s188 = sshll.u32 [#allocation2], 4
      %s189 = int_to_ptr.vmem [resolvable:$true] %s188
      %s190 = sshll.u32 %s6, 4
      %s191 = int_to_ptr.hbm [resolvable:$true] %s190
      %196 = dma.vmem_to_hbm [thread:$0]  %s189, 256, %s191, [#allocation3], 128, 128, 8
    $region29: #{tpu_custom_call.1} parent=1 // pred_fallthru
      _
    // Predicated region
    $region30: #{tpu_custom_call.1} parent=1 // pred_check
      _
    $region31: #{tpu_custom_call.1} parent=1 // pred_check_branch
      %198 = sbr.rel (0) target = $region33
    $region32: #{tpu_custom_call.1} parent=1 // pred_region
      %200 = dma.done [#allocation3], 256
    $region33: #{tpu_custom_call.1} parent=1 // pred_fallthru
      _
    %201 = vsyncpa [#allocation3], 1

</llo_original>
